<compile_context>
chip_gen: v7x
topology: tpu7x:2x2x1
jax: 0.10.0
libtpu: 0.0.40
codegen_flags: <defaults>
</compile_context>

<pallas_src>
import jax
import jax.numpy as jnp
from jax.experimental import pallas as pl
from jax.experimental.pallas import tpu as pltpu


def _round_up(x, m):
    return ((x + m - 1) // m) * m


# ----------------------------------------------------------------------------
# Fused MCRec kernel
# ----------------------------------------------------------------------------
def make_mcrec_kernel(T, D, A, offs, boffs):
    """T: #metapath types; D: latent_dim; A: att_size; offs/boffs: slab layout."""
    f32 = jnp.float32

    def kernel(*refs):
        ui_ref = refs[0]
        x_refs = refs[1:1 + T]
        w_ref = refs[1 + T]
        b_ref = refs[2 + T]
        o_ref = refs[3 + T]

        def wsl(name):                      # static slice into weight slab
            r0, nr, nc = offs[name]
            return w_ref[r0:r0 + nr, 0:nc]

        def bsl(name):                      # static slice into bias slab
            r0, nc = boffs[name]
            return b_ref[r0:r0 + 1, 0:nc]

        ui = ui_ref[...]                    # (TB, 2D) f32 = [user | item]
        TB = ui.shape[0]
        u = ui[:, 0:D]
        it = ui[:, D:2 * D]

        # ---- MetaPathEmbedding: one bf16 conv-as-matmul per type, ReLU,
        #      max over paths via static TB-row slices.  Dropout == identity.
        m_list = []
        for t in range(T):
            x = x_refs[t][...]                               # (P, TB, FH) bf16
            P, FH = x.shape[0], x.shape[2]
            cw = wsl(f"cw{t}").astype(jnp.bfloat16)          # (FH, D)
            cb = bsl(f"cb{t}")                               # (1, D) f32
            h = jnp.dot(x.reshape(P * TB, FH), cw,
                        preferred_element_type=f32)          # (P*TB, D) f32
            h = jnp.maximum(h + cb, 0.0)
            m = h[0:TB]
            for p in range(1, P):
                m = jnp.maximum(m, h[p * TB:(p + 1) * TB])
            m_list.append(m)                                 # (TB, D)

        # ---- MetaPathAttention ----
        base = jnp.dot(ui, wsl("w1_ui"),
                       preferred_element_type=f32) + bsl("b1")   # (TB, A)
        mm = jnp.dot(jnp.concatenate(m_list, axis=0), wsl("w1m"),
                     preferred_element_type=f32)                 # (T*TB, A)
        w2r = wsl("w2r")                                         # (1, A)
        b2 = bsl("b2")                                           # (1, 1)
        scores = []
        for t in range(T):
            h = jnp.maximum(base + mm[t * TB:(t + 1) * TB], 0.0)
            s = jnp.maximum(jnp.sum(h * w2r, axis=1, keepdims=True) + b2, 0.0)
            scores.append(s)                                     # (TB, 1)
        sc = jnp.concatenate(scores, axis=1)                     # (TB, T)
        e = jnp.exp(sc - jnp.max(sc, axis=1, keepdims=True))
        att = e * pl.reciprocal(jnp.sum(e, axis=1, keepdims=True), approx=True)
        path_att = m_list[0] * att[:, 0:1]
        for t in range(1, T):
            path_att = path_att + m_list[t] * att[:, t:t + 1]    # (TB, D)

        # ---- Fused UIAttention (user & item in one block-structured matmul)
        #      [u | it | path] @ [[wuu,0],[0,wiu],[wup,wip]] = [hu | hi]
        uip = jnp.concatenate([ui, path_att], axis=1)            # (TB, 3D)
        hui = jnp.maximum(
            jnp.dot(uip, wsl("w_ui_att"), preferred_element_type=f32)
            + bsl("b_ui_att"), 0.0)                              # (TB, 2A)
        hu = hui[:, 0:A]
        hi = hui[:, A:2 * A]

        def softmax_rows(h):
            ex = jnp.exp(h - jnp.max(h, axis=1, keepdims=True))
            return ex * pl.reciprocal(jnp.sum(ex, axis=1, keepdims=True),
                                      approx=True)

        user_att = u * softmax_rows(hu)                          # (TB, D)
        item_att = it * softmax_rows(hi)                         # (TB, D)

        # ---- MLP (2 layers) + predict + sigmoid ----
        x0 = jnp.maximum(
            jnp.dot(jnp.concatenate([user_att, item_att, path_att], axis=1),
                    wsl("wl0"), preferred_element_type=f32) + bsl("bl0"), 0.0)
        x1 = jnp.maximum(
            jnp.dot(x0, wsl("wl1"), preferred_element_type=f32) + bsl("bl1"),
            0.0)
        z = jnp.sum(x1 * wsl("wpr"), axis=1, keepdims=True) + bsl("bp")
        o_ref[...] = jax.nn.sigmoid(z)

    return kernel


# ----------------------------------------------------------------------------
# Forward wrapper (glue: gathers, layout transpose, bf16 cast, pallas_call)
# ----------------------------------------------------------------------------
def mcrec_forward(user_input, item_input, metapath_inputs, params, packed):
    w_slab, b_slab, offs, boffs = packed
    T = len(metapath_inputs)
    B = user_input.shape[0]
    D = params["user_table"].shape[1]
    A = params["w1u"].shape[1]
    assert D == A, "UIAttention (input * atten) requires latent_dim == att_size"

    # embedding lookups (gather) stay in glue; pre-concat user|item -> (B, 2D)
    u = params["user_table"][user_input.reshape(-1)]
    it = params["item_table"][item_input.reshape(-1)]
    ui = jnp.concatenate([u, it], axis=1).astype(jnp.float32)

    # (B, P, H, F) -> (P, B, H*F) in bf16: sublane-dense blocks in the kernel,
    # half the dominant HBM traffic.  Transpose happens once, in glue.
    x_list = []
    for x in metapath_inputs:
        _, P, H, F = x.shape
        x_list.append(
            jnp.transpose(x.reshape(B, P, H * F), (1, 0, 2)).astype(jnp.bfloat16))

    # Batch tiling: large tiles amortize per-step overhead; keep >=2 steps for
    # bigger batches (v7x megacore); cap TB for v7x's 64 MiB VMEM.
    MAX_TB = 1024
    if B >= 2 * MAX_TB:
        TB = MAX_TB
    elif B >= 512:
        TB = _round_up((B + 1) // 2, 16)
    else:
        TB = _round_up(max(B, 1), 16)
    B_pad = _round_up(B, TB)

    def pad_b(a, axis):
        if B_pad == B:
            return a
        pads = [(0, 0)] * a.ndim
        pads[axis] = (0, B_pad - B)
        return jnp.pad(a, pads)

    ui_p = pad_b(ui, 0)
    x_p = [pad_b(x, 1) for x in x_list]

    in_specs = [pl.BlockSpec((TB, 2 * D), lambda i: (i, 0))]          # [u|it]
    for x in x_p:
        P, FH = x.shape[0], x.shape[2]
        in_specs.append(pl.BlockSpec((P, TB, FH), lambda i: (0, i, 0)))
    in_specs.append(pl.BlockSpec(w_slab.shape, lambda i: (0, 0)))      # weights
    in_specs.append(pl.BlockSpec(b_slab.shape, lambda i: (0, 0)))      # biases

    # Advisory cost estimate (per-element flops x padded batch).
    L0, L1 = params["wl1"].shape
    conv_flops = sum(2 * x.shape[0] * x.shape[2] * D for x in x_p)
    per_elem = (conv_flops + 2 * (2 * D) * A + T * 2 * D * A + T * 2 * A
                + T * 2 * D + 2 * (3 * D) * (2 * A) + 2 * (3 * A) * L0
                + 2 * L0 * L1 + 2 * L1)
    cost = pl.CostEstimate(
        flops=int(per_elem) * int(B_pad),
        transcendentals=int(B_pad) * (T + 2 * A + 1),
        bytes_accessed=int(sum(x.size for x in x_p)) * 2
                       + int(ui_p.size) * 4 + int(B_pad) * 4
                       + int(w_slab.size) * 4 + int(b_slab.size) * 4)

    out = pl.pallas_call(
        make_mcrec_kernel(T, D, A, offs, boffs),
        out_shape=jax.ShapeDtypeStruct((B_pad, 1), jnp.float32),
        grid=(B_pad // TB,),
        in_specs=in_specs,
        out_specs=pl.BlockSpec((TB, 1), lambda i: (i, 0)),
        compiler_params=pltpu.CompilerParams(
            dimension_semantics=("parallel",),
            vmem_limit_bytes=48 * 1024 * 1024),
        cost_estimate=cost,
    )(ui_p, *x_p, w_slab, b_slab)
    return out[:B]


# ----------------------------------------------------------------------------
# Parameter construction + packing
# ----------------------------------------------------------------------------
def build_params(key, latent_dim, att_size, feature_size,
                 metapath_list_attributes, layer_size, user_num, item_num):
    assert len(layer_size) == 2, "fused kernel assumes a 2-layer MLP head"
    keys = iter(jax.random.split(key, 64))

    def nrm(shape, scale=0.1):
        return (scale * jax.random.normal(next(keys), shape)).astype(jnp.float32)

    D, A = latent_dim, att_size
    params = {
        "user_table": nrm((user_num + 1, D)),
        "item_table": nrm((item_num + 1, D)),
        "conv_w": [],
        "conv_b": [],
    }
    for (path_num, hop_num) in metapath_list_attributes:
        # torch conv1d weight (out=D, in=F, k=H) -> pre-flatten to (H*F, D)
        # (hop-major / feature-minor, matching x.reshape(B, P, H*F)).
        w = nrm((D, feature_size, hop_num))
        params["conv_w"].append(
            jnp.transpose(w, (2, 1, 0)).reshape(hop_num * feature_size, D))
        params["conv_b"].append(nrm((1, D)))

    # MetaPathAttention: Linear(3D->A), Linear(A->1)   (stored (in,out))
    params["w1u"], params["w1i"], params["w1m"] = nrm((D, A)), nrm((D, A)), nrm((D, A))
    params["b1"] = nrm((1, A))
    params["w2"], params["b2"] = nrm((A, 1)), nrm((1, 1))
    # UIAttention user / item: Linear(2D->A)
    params["wuu"], params["wup"], params["bu"] = nrm((D, A)), nrm((D, A)), nrm((1, A))
    params["wiu"], params["wip"], params["bi"] = nrm((D, A)), nrm((D, A)), nrm((1, A))
    # MLP: Linear(3A->L0) -> Linear(L0->L1) -> predict(L1->1)
    L0, L1 = layer_size
    params["wl0u"], params["wl0p"], params["wl0i"] = nrm((A, L0)), nrm((A, L0)), nrm((A, L0))
    params["bl0"] = nrm((1, L0))
    params["wl1"], params["bl1"] = nrm((L0, L1)), nrm((1, L1))
    params["wp"], params["bp"] = nrm((L1, 1)), nrm((1, 1))
    return params


def pack_params(p, T):
    """Pack ALL weights (incl. conv kernels) into one f32 slab and all biases
    into another, with 8-aligned row offsets and a 128-lane width.  Shared-LHS
    matmuls are pre-concatenated; the two UIAttention dense layers are merged
    into one block-structured (3D, 2A) matrix."""
    D = p["w1u"].shape[0]
    A = p["w1u"].shape[1]
    z = jnp.zeros((D, A), jnp.float32)

    sections = [(f"cw{t}", p["conv_w"][t]) for t in range(T)]
    sections += [
        ("w1_ui", jnp.concatenate([p["w1u"], p["w1i"]], axis=0)),          # (2D, A)
        ("w1m",   p["w1m"]),                                               # (D, A)
        ("w2r",   p["w2"].T),                                              # (1, A)
        ("w_ui_att", jnp.block([[p["wuu"], z],
                                [z, p["wiu"]],
                                [p["wup"], p["wip"]]])),                   # (3D, 2A)
        ("wl0",   jnp.concatenate([p["wl0u"], p["wl0i"], p["wl0p"]], axis=0)),  # (3A, L0)
        ("wl1",   p["wl1"]),                                               # (L0, L1)
        ("wpr",   p["wp"].T),                                              # (1, L1)
    ]
    lane = _round_up(max(w.shape[1] for _, w in sections), 128)

    offs, blocks, row = {}, [], 0
    for name, w in sections:
        r, c = w.shape
        rpad = _round_up(r, 8)
        blk = jnp.zeros((rpad, lane), jnp.float32).at[:r, :c].set(
            w.astype(jnp.float32))
        offs[name] = (row, r, c)
        blocks.append(blk)
        row += rpad
    w_slab = jnp.concatenate(blocks, axis=0)

    biases = [(f"cb{t}", p["conv_b"][t]) for t in range(T)]
    biases += [("b1", p["b1"]), ("b2", p["b2"]),
               ("b_ui_att", jnp.concatenate([p["bu"], p["bi"]], axis=1)),
               ("bl0", p["bl0"]), ("bl1", p["bl1"]), ("bp", p["bp"])]
    boffs, brows, row = {}, [], 0
    for name, b in biases:
        c = b.shape[-1]
        blk = jnp.zeros((8, lane), jnp.float32).at[0, :c].set(
            b.reshape(-1).astype(jnp.float32))
        boffs[name] = (row, c)
        brows.append(blk)
        row += 8
    b_slab = jnp.concatenate(brows, axis=0)
    return w_slab, b_slab, offs, boffs


# ----------------------------------------------------------------------------
# Pure-JAX reference (mirrors the PyTorch forward) for a correctness check
# ----------------------------------------------------------------------------
def mcrec_reference(user_input, item_input, metapath_inputs, p):
    B = user_input.shape[0]
    path_outs = []
    for i, x in enumerate(metapath_inputs):
        _, P, H, F = x.shape
        xf = x.reshape(B, P, H * F)
        h = jnp.maximum(jnp.einsum("bpk,kd->bpd", xf, p["conv_w"][i])
                        + p["conv_b"][i], 0.0)
        path_outs.append(jnp.max(h, axis=1))
    pth = jnp.stack(path_outs, axis=1)                       # (B, T, D)
    u = p["user_table"][user_input.reshape(-1)]
    it = p["item_table"][item_input.reshape(-1)]
    scores = []
    for t in range(pth.shape[1]):
        h = jnp.maximum(u @ p["w1u"] + it @ p["w1i"] + pth[:, t] @ p["w1m"]
                        + p["b1"], 0.0)
        scores.append(jnp.maximum(h @ p["w2"] + p["b2"], 0.0))
    att = jax.nn.softmax(jnp.concatenate(scores, axis=1), axis=1)
    path_att = jnp.sum(pth * att[:, :, None], axis=1)
    hu = jnp.maximum(u @ p["wuu"] + path_att @ p["wup"] + p["bu"], 0.0)
    user_att = u * jax.nn.softmax(hu, axis=1)
    hi = jnp.maximum(it @ p["wiu"] + path_att @ p["wip"] + p["bi"], 0.0)
    item_att = it * jax.nn.softmax(hi, axis=1)
    x0 = jnp.maximum(user_att @ p["wl0u"] + path_att @ p["wl0p"]
                     + item_att @ p["wl0i"] + p["bl0"], 0.0)
    x1 = jnp.maximum(x0 @ p["wl1"] + p["bl1"], 0.0)
    return jax.nn.sigmoid(x1 @ p["wp"] + p["bp"])


if __name__ == "__main__":
    latent_dim = 32          # == att_size (required for UIAttention broadcast)
    att_size = 32
    feature_size = 16
    metapath_list_attributes = [(3, 3), (2, 4)]   # (path_num, hop_num)
    layer_size = [64, 32]
    user_num, item_num = 50, 60
    B = 2

    key = jax.random.PRNGKey(0)
    k_params, k_u, k_i, k_m0, k_m1 = jax.random.split(key, 5)

    params = build_params(k_params, latent_dim, att_size, feature_size,
                          metapath_list_attributes, layer_size,
                          user_num, item_num)
    packed = pack_params(params, len(metapath_list_attributes))

    user_input = jax.random.randint(k_u, (B, 1), 0, user_num + 1, dtype=jnp.int32)
    item_input = jax.random.randint(k_i, (B, 1), 0, item_num + 1, dtype=jnp.int32)
    metapath_inputs = [
        jax.random.normal(k_m0, (B, 3, 3, feature_size), dtype=jnp.float32),
        jax.random.normal(k_m1, (B, 2, 4, feature_size), dtype=jnp.float32),
    ]

    out = mcrec_forward(user_input, item_input, metapath_inputs, params, packed)
    out = jax.block_until_ready(out)
    assert out.shape == (B, 1) and out.dtype == jnp.float32
    assert bool(jnp.all(jnp.isfinite(out)))

    # Reference with the same bf16 rounding of metapath inputs / conv kernels
    # that the kernel applies (everything else f32) -> isolates implementation
    # correctness from the deliberate mixed-precision choice.
    params_ref = dict(params)
    params_ref["conv_w"] = [w.astype(jnp.bfloat16).astype(jnp.float32)
                            for w in params["conv_w"]]
    metapath_ref = [x.astype(jnp.bfloat16).astype(jnp.float32)
                    for x in metapath_inputs]
    ref = mcrec_reference(user_input, item_input, metapath_ref, params_ref)
    assert bool(jnp.allclose(out, ref, atol=2e-2, rtol=2e-2))
    print("KERNEL_OK")
</pallas_src>

<mosaic_0001>
module attributes {stable_mosaic.version = 11 : i64} {
  func.func @kernel(%arg0: i32, %arg1: memref<16x64xf32, #tpu.memory_space<vmem>>, %arg2: memref<3x16x48xbf16, #tpu.memory_space<vmem>>, %arg3: memref<2x16x64xbf16, #tpu.memory_space<vmem>>, %arg4: memref<480x128xf32, #tpu.memory_space<vmem>>, %arg5: memref<64x128xf32, #tpu.memory_space<vmem>>, %arg6: memref<16x1xf32, #tpu.memory_space<vmem>>) attributes {dimension_semantics = [#tpu.dimension_semantics<parallel>], iteration_bounds = array<i64: 1>, scalar_prefetch = 0 : i64, scratch_operands = 0 : i64, tpu.core_type = #tpu.core_type<tc>, window_params = [{transform_indices = @transform_0, window_bounds = array<i64: 16, 64>}, {transform_indices = @transform_1, window_bounds = array<i64: 3, 16, 48>}, {transform_indices = @transform_2, window_bounds = array<i64: 2, 16, 64>}, {pipeline_mode = #tpu.pipeline_mode<synchronous>, transform_indices = @transform_3, window_bounds = array<i64: 480, 128>}, {pipeline_mode = #tpu.pipeline_mode<synchronous>, transform_indices = @transform_4, window_bounds = array<i64: 64, 128>}, {transform_indices = @transform_5, window_bounds = array<i64: 16, 1>}]} {
    %c0 = arith.constant 0 : index
    %c0_0 = arith.constant 0 : index
    %0 = vector.load %arg1[%c0, %c0_0] : memref<16x64xf32, #tpu.memory_space<vmem>>, vector<16x64xf32>
    %1 = vector.extract_strided_slice %0 {offsets = [0, 0], sizes = [16, 32], strides = [1, 1]} : vector<16x64xf32> to vector<16x32xf32>
    %2 = vector.extract_strided_slice %0 {offsets = [0, 32], sizes = [16, 32], strides = [1, 1]} : vector<16x64xf32> to vector<16x32xf32>
    %c0_1 = arith.constant 0 : index
    %c0_2 = arith.constant 0 : index
    %c0_3 = arith.constant 0 : index
    %3 = vector.load %arg2[%c0_1, %c0_2, %c0_3] : memref<3x16x48xbf16, #tpu.memory_space<vmem>>, vector<3x16x48xbf16>
    %c0_4 = arith.constant 0 : index
    %c0_5 = arith.constant 0 : index
    %4 = vector.load %arg4[%c0_4, %c0_5] : memref<480x128xf32, #tpu.memory_space<vmem>>, vector<48x32xf32>
    %5 = arith.truncf %4 : vector<48x32xf32> to vector<48x32xbf16>
    %c0_6 = arith.constant 0 : index
    %c0_7 = arith.constant 0 : index
    %6 = vector.load %arg5[%c0_6, %c0_7] : memref<64x128xf32, #tpu.memory_space<vmem>>, vector<1x32xf32>
    %7 = vector.shape_cast %3 : vector<3x16x48xbf16> to vector<48x48xbf16>
    %cst = arith.constant dense<0.000000e+00> : vector<48x32xf32>
    %8 = tpu.matmul %7, %5, %cst {dimension_numbers = #tpu.dot_dimension_numbers<[1], [0], [0], [1], [0, 0, 1, 1], [], []>} : vector<48x48xbf16>, vector<48x32xbf16>, vector<48x32xf32> -> vector<48x32xf32>
    %9 = vector.broadcast %6 : vector<1x32xf32> to vector<48x32xf32>
    %10 = arith.addf %8, %9 : vector<48x32xf32>
    %cst_8 = arith.constant 0.000000e+00 : f32
    %11 = vector.broadcast %cst_8 : f32 to vector<48x32xf32>
    %12 = arith.maximumf %10, %11 : vector<48x32xf32>
    %13 = vector.extract_strided_slice %12 {offsets = [0, 0], sizes = [16, 32], strides = [1, 1]} : vector<48x32xf32> to vector<16x32xf32>
    %14 = vector.extract_strided_slice %12 {offsets = [16, 0], sizes = [16, 32], strides = [1, 1]} : vector<48x32xf32> to vector<16x32xf32>
    %15 = arith.maximumf %13, %14 : vector<16x32xf32>
    %16 = vector.extract_strided_slice %12 {offsets = [32, 0], sizes = [16, 32], strides = [1, 1]} : vector<48x32xf32> to vector<16x32xf32>
    %17 = arith.maximumf %15, %16 : vector<16x32xf32>
    %c0_9 = arith.constant 0 : index
    %c0_10 = arith.constant 0 : index
    %c0_11 = arith.constant 0 : index
    %18 = vector.load %arg3[%c0_9, %c0_10, %c0_11] : memref<2x16x64xbf16, #tpu.memory_space<vmem>>, vector<2x16x64xbf16>
    %c48 = arith.constant 48 : index
    %c0_12 = arith.constant 0 : index
    %19 = vector.load %arg4[%c48, %c0_12] : memref<480x128xf32, #tpu.memory_space<vmem>>, vector<64x32xf32>
    %20 = arith.truncf %19 : vector<64x32xf32> to vector<64x32xbf16>
    %c8 = arith.constant 8 : index
    %c0_13 = arith.constant 0 : index
    %21 = vector.load %arg5[%c8, %c0_13] : memref<64x128xf32, #tpu.memory_space<vmem>>, vector<1x32xf32>
    %22 = vector.shape_cast %18 : vector<2x16x64xbf16> to vector<32x64xbf16>
    %cst_14 = arith.constant dense<0.000000e+00> : vector<32x32xf32>
    %23 = tpu.matmul %22, %20, %cst_14 {dimension_numbers = #tpu.dot_dimension_numbers<[1], [0], [0], [1], [0, 0, 1, 1], [], []>} : vector<32x64xbf16>, vector<64x32xbf16>, vector<32x32xf32> -> vector<32x32xf32>
    %24 = vector.broadcast %21 : vector<1x32xf32> to vector<32x32xf32>
    %25 = arith.addf %23, %24 : vector<32x32xf32>
    %cst_15 = arith.constant 0.000000e+00 : f32
    %26 = vector.broadcast %cst_15 : f32 to vector<32x32xf32>
    %27 = arith.maximumf %25, %26 : vector<32x32xf32>
    %28 = vector.extract_strided_slice %27 {offsets = [0, 0], sizes = [16, 32], strides = [1, 1]} : vector<32x32xf32> to vector<16x32xf32>
    %29 = vector.extract_strided_slice %27 {offsets = [16, 0], sizes = [16, 32], strides = [1, 1]} : vector<32x32xf32> to vector<16x32xf32>
    %30 = arith.maximumf %28, %29 : vector<16x32xf32>
    %c112 = arith.constant 112 : index
    %c0_16 = arith.constant 0 : index
    %31 = vector.load %arg4[%c112, %c0_16] : memref<480x128xf32, #tpu.memory_space<vmem>>, vector<64x32xf32>
    %cst_17 = arith.constant dense<0.000000e+00> : vector<16x32xf32>
    %32 = tpu.matmul %0, %31, %cst_17 {dimension_numbers = #tpu.dot_dimension_numbers<[1], [0], [0], [1], [0, 0, 1, 1], [], []>} : vector<16x64xf32>, vector<64x32xf32>, vector<16x32xf32> -> vector<16x32xf32>
    %c16 = arith.constant 16 : index
    %c0_18 = arith.constant 0 : index
    %33 = vector.load %arg5[%c16, %c0_18] : memref<64x128xf32, #tpu.memory_space<vmem>>, vector<1x32xf32>
    %34 = vector.broadcast %33 : vector<1x32xf32> to vector<16x32xf32>
    %35 = arith.addf %32, %34 : vector<16x32xf32>
    %36 = tpu.concatenate %17, %30 in 0 : vector<16x32xf32>, vector<16x32xf32> -> vector<32x32xf32>
    %c176 = arith.constant 176 : index
    %c0_19 = arith.constant 0 : index
    %37 = vector.load %arg4[%c176, %c0_19] : memref<480x128xf32, #tpu.memory_space<vmem>>, vector<32x32xf32>
    %cst_20 = arith.constant dense<0.000000e+00> : vector<32x32xf32>
    %38 = tpu.matmul %36, %37, %cst_20 {dimension_numbers = #tpu.dot_dimension_numbers<[1], [0], [0], [1], [0, 0, 1, 1], [], []>} : vector<32x32xf32>, vector<32x32xf32>, vector<32x32xf32> -> vector<32x32xf32>
    %c208 = arith.constant 208 : index
    %c0_21 = arith.constant 0 : index
    %39 = vector.load %arg4[%c208, %c0_21] : memref<480x128xf32, #tpu.memory_space<vmem>>, vector<1x32xf32>
    %c24 = arith.constant 24 : index
    %c0_22 = arith.constant 0 : index
    %40 = vector.load %arg5[%c24, %c0_22] : memref<64x128xf32, #tpu.memory_space<vmem>>, vector<1x1xf32>
    %41 = vector.extract_strided_slice %38 {offsets = [0, 0], sizes = [16, 32], strides = [1, 1]} : vector<32x32xf32> to vector<16x32xf32>
    %42 = arith.addf %35, %41 : vector<16x32xf32>
    %cst_23 = arith.constant 0.000000e+00 : f32
    %43 = vector.broadcast %cst_23 : f32 to vector<16x32xf32>
    %44 = arith.maximumf %42, %43 : vector<16x32xf32>
    %45 = vector.broadcast %39 : vector<1x32xf32> to vector<16x32xf32>
    %46 = arith.mulf %44, %45 : vector<16x32xf32>
    %cst_24 = arith.constant dense<0.000000e+00> : vector<16xf32>
    %47 = vector.multi_reduction <add>, %46, %cst_24 [1] : vector<16x32xf32> to vector<16xf32>
    %48 = vector.shape_cast %47 : vector<16xf32> to vector<16x1xf32>
    %49 = vector.broadcast %40 : vector<1x1xf32> to vector<16x1xf32>
    %50 = arith.addf %48, %49 : vector<16x1xf32>
    %cst_25 = arith.constant 0.000000e+00 : f32
    %51 = vector.broadcast %cst_25 : f32 to vector<16x1xf32>
    %52 = arith.maximumf %50, %51 : vector<16x1xf32>
    %53 = vector.extract_strided_slice %38 {offsets = [16, 0], sizes = [16, 32], strides = [1, 1]} : vector<32x32xf32> to vector<16x32xf32>
    %54 = arith.addf %35, %53 : vector<16x32xf32>
    %cst_26 = arith.constant 0.000000e+00 : f32
    %55 = vector.broadcast %cst_26 : f32 to vector<16x32xf32>
    %56 = arith.maximumf %54, %55 : vector<16x32xf32>
    %57 = vector.broadcast %39 : vector<1x32xf32> to vector<16x32xf32>
    %58 = arith.mulf %56, %57 : vector<16x32xf32>
    %cst_27 = arith.constant dense<0.000000e+00> : vector<16xf32>
    %59 = vector.multi_reduction <add>, %58, %cst_27 [1] : vector<16x32xf32> to vector<16xf32>
    %60 = vector.shape_cast %59 : vector<16xf32> to vector<16x1xf32>
    %61 = vector.broadcast %40 : vector<1x1xf32> to vector<16x1xf32>
    %62 = arith.addf %60, %61 : vector<16x1xf32>
    %cst_28 = arith.constant 0.000000e+00 : f32
    %63 = vector.broadcast %cst_28 : f32 to vector<16x1xf32>
    %64 = arith.maximumf %62, %63 : vector<16x1xf32>
    %65 = tpu.concatenate %52, %64 in 1 : vector<16x1xf32>, vector<16x1xf32> -> vector<16x2xf32>
    %cst_29 = arith.constant dense<0xFF800000> : vector<16xf32>
    %66 = vector.multi_reduction <maximumf>, %65, %cst_29 [1] : vector<16x2xf32> to vector<16xf32>
    %67 = vector.shape_cast %66 : vector<16xf32> to vector<16x1xf32>
    %68 = vector.broadcast %67 : vector<16x1xf32> to vector<16x2xf32>
    %69 = arith.subf %65, %68 : vector<16x2xf32>
    %70 = math.exp %69 : vector<16x2xf32>
    %cst_30 = arith.constant dense<0.000000e+00> : vector<16xf32>
    %71 = vector.multi_reduction <add>, %70, %cst_30 [1] : vector<16x2xf32> to vector<16xf32>
    %72 = vector.shape_cast %71 : vector<16xf32> to vector<16x1xf32>
    %73 = tpu.reciprocal %72 {approx = true} : vector<16x1xf32> -> vector<16x1xf32>
    %74 = vector.broadcast %73 : vector<16x1xf32> to vector<16x2xf32>
    %75 = arith.mulf %70, %74 : vector<16x2xf32>
    %76 = vector.extract_strided_slice %75 {offsets = [0, 0], sizes = [16, 1], strides = [1, 1]} : vector<16x2xf32> to vector<16x1xf32>
    %77 = vector.broadcast %76 : vector<16x1xf32> to vector<16x32xf32>
    %78 = arith.mulf %17, %77 : vector<16x32xf32>
    %79 = vector.extract_strided_slice %75 {offsets = [0, 1], sizes = [16, 1], strides = [1, 1]} : vector<16x2xf32> to vector<16x1xf32>
    %80 = vector.broadcast %79 : vector<16x1xf32> to vector<16x32xf32>
    %81 = arith.mulf %30, %80 : vector<16x32xf32>
    %82 = arith.addf %78, %81 : vector<16x32xf32>
    %83 = tpu.concatenate %0, %82 in 1 : vector<16x64xf32>, vector<16x32xf32> -> vector<16x96xf32>
    %c216 = arith.constant 216 : index
    %c0_31 = arith.constant 0 : index
    %84 = vector.load %arg4[%c216, %c0_31] : memref<480x128xf32, #tpu.memory_space<vmem>>, vector<96x64xf32>
    %cst_32 = arith.constant dense<0.000000e+00> : vector<16x64xf32>
    %85 = tpu.matmul %83, %84, %cst_32 {dimension_numbers = #tpu.dot_dimension_numbers<[1], [0], [0], [1], [0, 0, 1, 1], [], []>} : vector<16x96xf32>, vector<96x64xf32>, vector<16x64xf32> -> vector<16x64xf32>
    %c32 = arith.constant 32 : index
    %c0_33 = arith.constant 0 : index
    %86 = vector.load %arg5[%c32, %c0_33] : memref<64x128xf32, #tpu.memory_space<vmem>>, vector<1x64xf32>
    %87 = vector.broadcast %86 : vector<1x64xf32> to vector<16x64xf32>
    %88 = arith.addf %85, %87 : vector<16x64xf32>
    %cst_34 = arith.constant 0.000000e+00 : f32
    %89 = vector.broadcast %cst_34 : f32 to vector<16x64xf32>
    %90 = arith.maximumf %88, %89 : vector<16x64xf32>
    %91 = vector.extract_strided_slice %90 {offsets = [0, 0], sizes = [16, 32], strides = [1, 1]} : vector<16x64xf32> to vector<16x32xf32>
    %92 = vector.extract_strided_slice %90 {offsets = [0, 32], sizes = [16, 32], strides = [1, 1]} : vector<16x64xf32> to vector<16x32xf32>
    %cst_35 = arith.constant dense<0xFF800000> : vector<16xf32>
    %93 = vector.multi_reduction <maximumf>, %91, %cst_35 [1] : vector<16x32xf32> to vector<16xf32>
    %94 = vector.shape_cast %93 : vector<16xf32> to vector<16x1xf32>
    %95 = vector.broadcast %94 : vector<16x1xf32> to vector<16x32xf32>
    %96 = arith.subf %91, %95 : vector<16x32xf32>
    %97 = math.exp %96 : vector<16x32xf32>
    %cst_36 = arith.constant dense<0.000000e+00> : vector<16xf32>
    %98 = vector.multi_reduction <add>, %97, %cst_36 [1] : vector<16x32xf32> to vector<16xf32>
    %99 = vector.shape_cast %98 : vector<16xf32> to vector<16x1xf32>
    %100 = tpu.reciprocal %99 {approx = true} : vector<16x1xf32> -> vector<16x1xf32>
    %101 = vector.broadcast %100 : vector<16x1xf32> to vector<16x32xf32>
    %102 = arith.mulf %97, %101 : vector<16x32xf32>
    %103 = arith.mulf %1, %102 : vector<16x32xf32>
    %cst_37 = arith.constant dense<0xFF800000> : vector<16xf32>
    %104 = vector.multi_reduction <maximumf>, %92, %cst_37 [1] : vector<16x32xf32> to vector<16xf32>
    %105 = vector.shape_cast %104 : vector<16xf32> to vector<16x1xf32>
    %106 = vector.broadcast %105 : vector<16x1xf32> to vector<16x32xf32>
    %107 = arith.subf %92, %106 : vector<16x32xf32>
    %108 = math.exp %107 : vector<16x32xf32>
    %cst_38 = arith.constant dense<0.000000e+00> : vector<16xf32>
    %109 = vector.multi_reduction <add>, %108, %cst_38 [1] : vector<16x32xf32> to vector<16xf32>
    %110 = vector.shape_cast %109 : vector<16xf32> to vector<16x1xf32>
    %111 = tpu.reciprocal %110 {approx = true} : vector<16x1xf32> -> vector<16x1xf32>
    %112 = vector.broadcast %111 : vector<16x1xf32> to vector<16x32xf32>
    %113 = arith.mulf %108, %112 : vector<16x32xf32>
    %114 = arith.mulf %2, %113 : vector<16x32xf32>
    %115 = tpu.concatenate %103, %114, %82 in 1 : vector<16x32xf32>, vector<16x32xf32>, vector<16x32xf32> -> vector<16x96xf32>
    %c312 = arith.constant 312 : index
    %c0_39 = arith.constant 0 : index
    %116 = vector.load %arg4[%c312, %c0_39] : memref<480x128xf32, #tpu.memory_space<vmem>>, vector<96x64xf32>
    %cst_40 = arith.constant dense<0.000000e+00> : vector<16x64xf32>
    %117 = tpu.matmul %115, %116, %cst_40 {dimension_numbers = #tpu.dot_dimension_numbers<[1], [0], [0], [1], [0, 0, 1, 1], [], []>} : vector<16x96xf32>, vector<96x64xf32>, vector<16x64xf32> -> vector<16x64xf32>
    %c40 = arith.constant 40 : index
    %c0_41 = arith.constant 0 : index
    %118 = vector.load %arg5[%c40, %c0_41] : memref<64x128xf32, #tpu.memory_space<vmem>>, vector<1x64xf32>
    %119 = vector.broadcast %118 : vector<1x64xf32> to vector<16x64xf32>
    %120 = arith.addf %117, %119 : vector<16x64xf32>
    %cst_42 = arith.constant 0.000000e+00 : f32
    %121 = vector.broadcast %cst_42 : f32 to vector<16x64xf32>
    %122 = arith.maximumf %120, %121 : vector<16x64xf32>
    %c408 = arith.constant 408 : index
    %c0_43 = arith.constant 0 : index
    %123 = vector.load %arg4[%c408, %c0_43] : memref<480x128xf32, #tpu.memory_space<vmem>>, vector<64x32xf32>
    %cst_44 = arith.constant dense<0.000000e+00> : vector<16x32xf32>
    %124 = tpu.matmul %122, %123, %cst_44 {dimension_numbers = #tpu.dot_dimension_numbers<[1], [0], [0], [1], [0, 0, 1, 1], [], []>} : vector<16x64xf32>, vector<64x32xf32>, vector<16x32xf32> -> vector<16x32xf32>
    %c48_45 = arith.constant 48 : index
    %c0_46 = arith.constant 0 : index
    %125 = vector.load %arg5[%c48_45, %c0_46] : memref<64x128xf32, #tpu.memory_space<vmem>>, vector<1x32xf32>
    %126 = vector.broadcast %125 : vector<1x32xf32> to vector<16x32xf32>
    %127 = arith.addf %124, %126 : vector<16x32xf32>
    %cst_47 = arith.constant 0.000000e+00 : f32
    %128 = vector.broadcast %cst_47 : f32 to vector<16x32xf32>
    %129 = arith.maximumf %127, %128 : vector<16x32xf32>
    %c472 = arith.constant 472 : index
    %c0_48 = arith.constant 0 : index
    %130 = vector.load %arg4[%c472, %c0_48] : memref<480x128xf32, #tpu.memory_space<vmem>>, vector<1x32xf32>
    %131 = vector.broadcast %130 : vector<1x32xf32> to vector<16x32xf32>
    %132 = arith.mulf %129, %131 : vector<16x32xf32>
    %cst_49 = arith.constant dense<0.000000e+00> : vector<16xf32>
    %133 = vector.multi_reduction <add>, %132, %cst_49 [1] : vector<16x32xf32> to vector<16xf32>
    %134 = vector.shape_cast %133 : vector<16xf32> to vector<16x1xf32>
    %c56 = arith.constant 56 : index
    %c0_50 = arith.constant 0 : index
    %135 = vector.load %arg5[%c56, %c0_50] : memref<64x128xf32, #tpu.memory_space<vmem>>, vector<1x1xf32>
    %136 = vector.broadcast %135 : vector<1x1xf32> to vector<16x1xf32>
    %137 = arith.addf %134, %136 : vector<16x1xf32>
    %138 = arith.negf %137 : vector<16x1xf32>
    %139 = math.exp %138 : vector<16x1xf32>
    %cst_51 = arith.constant 1.000000e+00 : f32
    %140 = vector.broadcast %cst_51 : f32 to vector<16x1xf32>
    %141 = arith.addf %140, %139 : vector<16x1xf32>
    %142 = arith.divf %140, %141 : vector<16x1xf32>
    %c0_52 = arith.constant 0 : index
    %c0_53 = arith.constant 0 : index
    %143 = vector.load %arg6[%c0_52, %c0_53] : memref<16x1xf32, #tpu.memory_space<vmem>>, vector<16x1xf32>
    tpu.vector_store %arg6[%c0_52, %c0_53], %142 {strides = array<i32>} : memref<16x1xf32, #tpu.memory_space<vmem>>, vector<16x1xf32>,
    return
  }
  func.func @transform_0(%arg0: i32) -> (i32, i32) {
    %c0_i32 = arith.constant 0 : i32
    %c0_i32_0 = arith.constant 0 : i32
    return %arg0, %c0_i32 : i32, i32
  }
  func.func @transform_1(%arg0: i32) -> (i32, i32, i32) {
    %c0_i32 = arith.constant 0 : i32
    %c0_i32_0 = arith.constant 0 : i32
    %c0_i32_1 = arith.constant 0 : i32
    return %c0_i32, %arg0, %c0_i32_0 : i32, i32, i32
  }
  func.func @transform_2(%arg0: i32) -> (i32, i32, i32) {
    %c0_i32 = arith.constant 0 : i32
    %c0_i32_0 = arith.constant 0 : i32
    %c0_i32_1 = arith.constant 0 : i32
    return %c0_i32, %arg0, %c0_i32_0 : i32, i32, i32
  }
  func.func @transform_3(%arg0: i32) -> (i32, i32) {
    %c0_i32 = arith.constant 0 : i32
    %c0_i32_0 = arith.constant 0 : i32
    %c0_i32_1 = arith.constant 0 : i32
    return %c0_i32, %c0_i32_0 : i32, i32
  }
  func.func @transform_4(%arg0: i32) -> (i32, i32) {
    %c0_i32 = arith.constant 0 : i32
    %c0_i32_0 = arith.constant 0 : i32
    %c0_i32_1 = arith.constant 0 : i32
    return %c0_i32, %c0_i32_0 : i32, i32
  }
  func.func @transform_5(%arg0: i32) -> (i32, i32) {
    %c0_i32 = arith.constant 0 : i32
    %c0_i32_0 = arith.constant 0 : i32
    return %arg0, %c0_i32 : i32, i32
  }
}

</mosaic_0001>

<llo_original>
// kernel: tpu_custom_call.1
$region0: #{tpu_custom_call.1}
  #allocation0 [shape = 'u32[]', space=smem, size = 0x4, offset = 0x4, fixed_abs, tag = 'smem constant byte address 0x4 - core index']
  #allocation1 [shape = 'u32[144,128]{1,0:T(1,128)}', space=vmem, size = 0x12000, scoped, tag = 'internal scratch']
  %s0 = inlined_call_operand.hbm [shape: f32[16,64], index: 0, kind: input, shape index: {}]
  %s1 = inlined_call_operand.hbm [shape: bf16[3,16,48], index: 1, kind: input, shape index: {}]
  %s2 = inlined_call_operand.hbm [shape: bf16[2,16,64], index: 2, kind: input, shape index: {}]
  %s3 = inlined_call_operand.hbm [shape: f32[480,128], index: 3, kind: input, shape index: {}]
  %s4 = inlined_call_operand.hbm [shape: f32[64,128], index: 4, kind: input, shape index: {}]
  %s5 = inlined_call_operand.vmem [shape: f32[16,1], index: 5, kind: output, shape index: {}]
  %s6 = sld [smem:[#allocation0]]
  $region50: #{tpu_custom_call.1} parent=0
    _
  %s8 = ssub.s32 1, %s6
  %s9 = scalar_select 0, %s8, %s6
  $region1: #{tpu_custom_call.1} parent=0
    #allocation2 [shape = 'u8[8192]{0}', space=vmem, size = 0x2000, scoped, tag = 'input window, operand 0, single buffered']
    #allocation3 [shape = 's32[1]{0}', space=sflag, size = 0x4, scoped, tag = 'scoped memory for tpu_custom_call.1']
    #allocation4 [shape = 'u8[12288]{0}', space=vmem, size = 0x3000, scoped, tag = 'input window, operand 1, single buffered']
    #allocation5 [shape = 's32[1]{0}', space=sflag, size = 0x4, scoped, tag = 'scoped memory for tpu_custom_call.1']
    #allocation6 [shape = 'u8[8192]{0}', space=vmem, size = 0x2000, scoped, tag = 'input window, operand 2, single buffered']
    #allocation7 [shape = 'u8[245760]{0}', space=vmem, size = 0x3c000, scoped, tag = 'input window, operand 3, single buffered']
    #allocation8 [shape = 's32[1]{0}', space=sflag, size = 0x4, scoped, tag = 'scoped memory for tpu_custom_call.1']
    #allocation9 [shape = 'u8[32768]{0}', space=vmem, size = 0x8000, scoped, tag = 'input window, operand 4, single buffered']
    %10 = vsyncpa [#allocation3], 0
    %11 = vsyncpa [#allocation5], 0
    %12 = vsyncpa [#allocation8], 0
    // Predicated region
    $region2: #{tpu_custom_call.1} parent=1 // pred_check
      _
    $region3: #{tpu_custom_call.1} parent=1 // pred_check_branch
      %14 = sbr.rel (0) target = $region5
    $region4: #{tpu_custom_call.1} parent=1 // pred_region
      %s16 = ssub.s32 256, 256
      %17 = vsyncadd [#allocation3], %s16
      %s18 = sshll.u32 [#allocation2], 4
      %s19 = int_to_ptr.vmem [resolvable:$true] %s18
      %24 = dma.hbm_to_vmem [thread:$0]  %s0, 256, %s19, [#allocation3], 128, 128, 8
    $region5: #{tpu_custom_call.1} parent=1 // pred_fallthru
      _
    // Predicated region
    $region6: #{tpu_custom_call.1} parent=1 // pred_check
      _
    $region7: #{tpu_custom_call.1} parent=1 // pred_check_branch
      %26 = sbr.rel (0) target = $region9
    $region8: #{tpu_custom_call.1} parent=1 // pred_region
      %s28 = ssub.s32 384, 384
      %29 = vsyncadd [#allocation5], %s28
      %s30 = sshll.u32 [#allocation4], 4
      %s31 = int_to_ptr.vmem [resolvable:$true] %s30
      %36 = dma.hbm_to_vmem [thread:$0]  %s1, 384, %s31, [#allocation5], 64, 64, 4
    $region9: #{tpu_custom_call.1} parent=1 // pred_fallthru
      _
    // Predicated region
    $region10: #{tpu_custom_call.1} parent=1 // pred_check
      _
    $region11: #{tpu_custom_call.1} parent=1 // pred_check_branch
      %38 = sbr.rel (0) target = $region13
    $region12: #{tpu_custom_call.1} parent=1 // pred_region
      %s40 = ssub.s32 256, 256
      %41 = vsyncadd [#allocation5], %s40
      %s42 = sshll.u32 [#allocation6], 4
      %s43 = int_to_ptr.vmem [resolvable:$true] %s42
      %48 = dma.hbm_to_vmem [thread:$0]  %s2, 256, %s43, [#allocation5], 64, 64, 4
    $region13: #{tpu_custom_call.1} parent=1 // pred_fallthru
      _
    // Predicated region
    $region14: #{tpu_custom_call.1} parent=1 // pred_check
      _
    $region15: #{tpu_custom_call.1} parent=1 // pred_check_branch
      %50 = sbr.rel (0) target = $region17
    $region16: #{tpu_custom_call.1} parent=1 // pred_region
      %s52 = ssub.s32 7680, 7680
      %53 = vsyncadd [#allocation8], %s52
      %s54 = sshll.u32 [#allocation7], 4
      %s55 = int_to_ptr.vmem [resolvable:$true] %s54
      %60 = dma.hbm_to_vmem [thread:$0]  %s3, 7680, %s55, [#allocation8], 128, 128, 8
    $region17: #{tpu_custom_call.1} parent=1 // pred_fallthru
      _
    // Predicated region
    $region18: #{tpu_custom_call.1} parent=1 // pred_check
      _
    $region19: #{tpu_custom_call.1} parent=1 // pred_check_branch
      %62 = sbr.rel (0) target = $region21
    $region20: #{tpu_custom_call.1} parent=1 // pred_region
      %s64 = ssub.s32 1024, 1024
      %65 = vsyncadd [#allocation8], %s64
      %s66 = sshll.u32 [#allocation9], 4
      %s67 = int_to_ptr.vmem [resolvable:$true] %s66
      %72 = dma.hbm_to_vmem [thread:$0]  %s4, 1024, %s67, [#allocation8], 128, 128, 8
    $region21: #{tpu_custom_call.1} parent=1 // pred_fallthru
      _
    // Predicated region
    $region22: #{tpu_custom_call.1} parent=1 // pred_check
      _
    $region23: #{tpu_custom_call.1} parent=1 // pred_check_branch
      %74 = sbr.rel (0) target = $region25
    $region24: #{tpu_custom_call.1} parent=1 // pred_region
      %75 = dma.done [#allocation3], 256
    $region25: #{tpu_custom_call.1} parent=1 // pred_fallthru
      _
    // Predicated region
    $region26: #{tpu_custom_call.1} parent=1 // pred_check
      _
    $region27: #{tpu_custom_call.1} parent=1 // pred_check_branch
      %77 = sbr.rel (0) target = $region29
    $region28: #{tpu_custom_call.1} parent=1 // pred_region
      %78 = dma.done [#allocation5], 384
    $region29: #{tpu_custom_call.1} parent=1 // pred_fallthru
      _
    // Predicated region
    $region30: #{tpu_custom_call.1} parent=1 // pred_check
      _
    $region31: #{tpu_custom_call.1} parent=1 // pred_check_branch
      %80 = sbr.rel (0) target = $region33
    $region32: #{tpu_custom_call.1} parent=1 // pred_region
      %81 = dma.done [#allocation5], 256
    $region33: #{tpu_custom_call.1} parent=1 // pred_fallthru
      _
    // Predicated region
    $region34: #{tpu_custom_call.1} parent=1 // pred_check
      _
    $region35: #{tpu_custom_call.1} parent=1 // pred_check_branch
      %83 = sbr.rel (0) target = $region37
    $region36: #{tpu_custom_call.1} parent=1 // pred_region
      %84 = dma.done [#allocation8], 7680
    $region37: #{tpu_custom_call.1} parent=1 // pred_fallthru
      _
    // Predicated region
    $region38: #{tpu_custom_call.1} parent=1 // pred_check
      _
    $region39: #{tpu_custom_call.1} parent=1 // pred_check_branch
      %86 = sbr.rel (0) target = $region41
    $region40: #{tpu_custom_call.1} parent=1 // pred_region
      %87 = dma.done [#allocation8], 1024
    $region41: #{tpu_custom_call.1} parent=1 // pred_fallthru
      _
    %v89 = vld [vmem:[#allocation2] sm:$0xff]
    %v90 = vld [vmem:[#allocation2 + $0x8] sm:$0xff]
    %v91 = vld [vmem:[#allocation4] sm:$0xf]
    %v92 = vld [vmem:[#allocation4 + $0x4] sm:$0xf]
    %v93 = vld [vmem:[#allocation4 + $0x8] sm:$0xf]
    %v94 = vld [vmem:[#allocation4 + $0xc] sm:$0xf]
    %v95 = vld [vmem:[#allocation4 + $0x10] sm:$0xf]
    %v96 = vld [vmem:[#allocation4 + $0x14] sm:$0xf]
    %v97 = vld [vmem:[#allocation7] sm:$0xff]
    %v98 = vld [vmem:[#allocation7 + $0x8] sm:$0xff]
    %v99 = vld [vmem:[#allocation7 + $0x10] sm:$0xff]
    %v100 = vld [vmem:[#allocation7 + $0x18] sm:$0xff]
    %v101 = vld [vmem:[#allocation7 + $0x20] sm:$0xff]
    %v102 = vld [vmem:[#allocation7 + $0x28] sm:$0xff]
    %v103 = vpack.c.bf16 %v98, %v97
    %v104 = vpack.c.bf16 %v100, %v99
    %v105 = vpack.c.bf16 %v102, %v101
    %v106 = vld [vmem:[#allocation9] sm:$0x1]
    %v107 = vlaneseq
    %v108 = vshrl.u32 %v107, 7
    %v109 = vsub.s32 0, %v108
    %v110 = vrot.slane %v106, %v109
    %v117 = vunpack.c.l.b16 %v91
    %v118 = vunpack.c.l.b16 %v92
    %v119 = vunpack.c.l.b16 %v93
    %v120 = vunpack.c.l.b16 %v94
    %v121 = vunpack.c.l.b16 %v95
    %v122 = vunpack.c.l.b16 %v96
    %v123 = vpack.c.b16 %v118, %v117
    %v124 = vpack.c.b16 %v120, %v119
    %v125 = vpack.c.b16 %v122, %v121
    %vm126 = vcmask 392192
    %v128 = vsel %vm126, %v123, 0
    %v131 = vsel %vm126, %v124, 0
    %v134 = vsel %vm126, %v125, 0
    %136 = vmatprep.subr.bf16.mxu0 0
    %137 = vmatpush1.bf16.msra.mxu0 %v103
    %138 = vmatprep.subr.bf16.mxu0 0
    %139 = vmatpush1.bf16.msra.mxu0 %v104
    %140 = vmatprep.subr.bf16.mxu0 0
    %141 = vmatpush1.bf16.msra.mxu0 %v105
    %142 = vmatprep.subr.bf16.mxu0 0
    %143 = vmatpush1.bf16.msra.mxu0 0
    %144 = vmatprep.subr.bf16.mxu0 0
    %145 = vmatpush1.bf16.msra.mxu0 0
    %146 = vmatprep.subr.bf16.mxu0 0
    %147 = vmatpush1.bf16.msra.mxu0 0
    %148 = vmatprep.subr.bf16.mxu0 0
    %149 = vmatpush1.bf16.msra.mxu0 0
    %150 = vmatprep.subr.bf16.mxu0 0
    %151 = vmatpush1.bf16.msra.mxu0 0
    %152 = vmatprep.subr.bf16.mxu0 0
    %153 = vmatpush1.bf16.msra.mxu0 0
    %154 = vmatprep.subr.bf16.mxu0 0
    %155 = vmatpush1.bf16.msra.mxu0 0
    %156 = vmatprep.subr.bf16.mxu0 0
    %157 = vmatpush1.bf16.msra.mxu0 0
    %158 = vmatprep.subr.bf16.mxu0 0
    %159 = vmatpush1.bf16.msra.mxu0 0
    %160 = vmatprep.subr.bf16.mxu0 0
    %161 = vmatpush1.bf16.msra.mxu0 0
    %162 = vmatprep.subr.bf16.mxu0 0
    %163 = vmatpush1.bf16.msra.mxu0 0
    %164 = vmatprep.subr.bf16.mxu0 0
    %165 = vmatpush1.bf16.msra.mxu0 0
    %166 = vmatprep.subr.bf16.mxu0 0
    %167 = vmatpush1.bf16.msra.mxu0 0
    %168 = vmatprep.mubr.bf16.mxu0 0
    %169 = vmatmul.mubr.bf16.gmra.mrb[0].mxu0 %v128
    %v170 = vpop.f32.mrb[0].mxu0
    %v171 = vadd.f32 %v110, %v170
    %v172 = vpop.f32.mrb[0].mxu0
    %v173 = vpop.f32.mrb[0].mxu0
    %v174 = vadd.f32 %v110, %v173
    %v175 = vpop.f32.mrb[0].mxu0
    %176 = vmatprep.mubr.bf16.mxu0 0
    %177 = vmatmul.mubr.bf16.gmra.mrb[0].mxu0 %v131
    %v178 = vpop.f32.mrb[0].mxu0
    %v179 = vadd.f32 %v110, %v178
    %v180 = vpop.f32.mrb[0].mxu0
    %v181 = vpop.f32.mrb[0].mxu0
    %v182 = vadd.f32 %v110, %v181
    %v183 = vpop.f32.mrb[0].mxu0
    %184 = vmatprep.mubr.bf16.mxu0 0
    %185 = vmatmul.mubr.bf16.gmra.mrb[0].mxu0 %v134
    %v186 = vpop.f32.mrb[0].mxu0
    %v187 = vadd.f32 %v110, %v186
    %v188 = vpop.f32.mrb[0].mxu0
    %v189 = vpop.f32.mrb[0].mxu0
    %v190 = vadd.f32 %v110, %v189
    %v191 = vpop.f32.mrb[0].mxu0
    %192 = vdwg.mxu0
    %v193 = vmax.f32 %v171, 0.0
    %v194 = vmax.f32 %v174, 0.0
    %v195 = vmax.f32 %v179, 0.0
    %v196 = vmax.f32 %v182, 0.0
    %v197 = vmax.f32 %v187, 0.0
    %v198 = vmax.f32 %v190, 0.0
    %v199 = vmax.f32 %v193, %v195
    %v200 = vmax.f32 %v194, %v196
    %v201 = vmax.f32 %v199, %v197
    %v202 = vmax.f32 %v200, %v198
    %v203 = vld [vmem:[#allocation6] sm:$0xf]
    %v204 = vld [vmem:[#allocation6 + $0x4] sm:$0xf]
    %v205 = vld [vmem:[#allocation6 + $0x8] sm:$0xf]
    %v206 = vld [vmem:[#allocation6 + $0xc] sm:$0xf]
    %v207 = vld [vmem:[#allocation7 + $0x30] sm:$0xff]
    %v208 = vld [vmem:[#allocation7 + $0x38] sm:$0xff]
    %v209 = vld [vmem:[#allocation7 + $0x40] sm:$0xff]
    %v210 = vld [vmem:[#allocation7 + $0x48] sm:$0xff]
    %v211 = vld [vmem:[#allocation7 + $0x50] sm:$0xff]
    %v212 = vld [vmem:[#allocation7 + $0x58] sm:$0xff]
    %v213 = vld [vmem:[#allocation7 + $0x60] sm:$0xff]
    %v214 = vld [vmem:[#allocation7 + $0x68] sm:$0xff]
    %v215 = vpack.c.bf16 %v208, %v207
    %v216 = vpack.c.bf16 %v210, %v209
    %v217 = vpack.c.bf16 %v212, %v211
    %v218 = vpack.c.bf16 %v214, %v213
    %v219 = vld [vmem:[#allocation9 + $0x8] sm:$0x1]
    %v220 = vlaneseq
    %v221 = vshrl.u32 %v220, 7
    %v222 = vsub.s32 0, %v221
    %v223 = vrot.slane %v219, %v222
    %v228 = vunpack.c.l.b16 %v203
    %v229 = vunpack.c.l.b16 %v204
    %v230 = vunpack.c.l.b16 %v205
    %v231 = vunpack.c.l.b16 %v206
    %v232 = vpack.c.b16 %v229, %v228
    %v233 = vpack.c.b16 %v231, %v230
    %vm234 = vcmask 523264
    %v236 = vsel %vm234, %v232, 0
    %v239 = vsel %vm234, %v233, 0
    %241 = vmatprep.subr.bf16.mxu0 0
    %242 = vmatpush1.bf16.msra.mxu0 %v215
    %243 = vmatprep.subr.bf16.mxu0 0
    %244 = vmatpush1.bf16.msra.mxu0 %v216
    %245 = vmatprep.subr.bf16.mxu0 0
    %246 = vmatpush1.bf16.msra.mxu0 %v217
    %247 = vmatprep.subr.bf16.mxu0 0
    %248 = vmatpush1.bf16.msra.mxu0 %v218
    %249 = vmatprep.subr.bf16.mxu0 0
    %250 = vmatpush1.bf16.msra.mxu0 0
    %251 = vmatprep.subr.bf16.mxu0 0
    %252 = vmatpush1.bf16.msra.mxu0 0
    %253 = vmatprep.subr.bf16.mxu0 0
    %254 = vmatpush1.bf16.msra.mxu0 0
    %255 = vmatprep.subr.bf16.mxu0 0
    %256 = vmatpush1.bf16.msra.mxu0 0
    %257 = vmatprep.subr.bf16.mxu0 0
    %258 = vmatpush1.bf16.msra.mxu0 0
    %259 = vmatprep.subr.bf16.mxu0 0
    %260 = vmatpush1.bf16.msra.mxu0 0
    %261 = vmatprep.subr.bf16.mxu0 0
    %262 = vmatpush1.bf16.msra.mxu0 0
    %263 = vmatprep.subr.bf16.mxu0 0
    %264 = vmatpush1.bf16.msra.mxu0 0
    %265 = vmatprep.subr.bf16.mxu0 0
    %266 = vmatpush1.bf16.msra.mxu0 0
    %267 = vmatprep.subr.bf16.mxu0 0
    %268 = vmatpush1.bf16.msra.mxu0 0
    %269 = vmatprep.subr.bf16.mxu0 0
    %270 = vmatpush1.bf16.msra.mxu0 0
    %271 = vmatprep.subr.bf16.mxu0 0
    %272 = vmatpush1.bf16.msra.mxu0 0
    %273 = vmatprep.mubr.bf16.mxu0 0
    %274 = vmatmul.mubr.bf16.gmra.mrb[0].mxu0 %v236
    %v275 = vpop.f32.mrb[0].mxu0
    %v276 = vadd.f32 %v223, %v275
    %v277 = vpop.f32.mrb[0].mxu0
    %v278 = vpop.f32.mrb[0].mxu0
    %v279 = vadd.f32 %v223, %v278
    %v280 = vpop.f32.mrb[0].mxu0
    %281 = vmatprep.mubr.bf16.mxu0 0
    %282 = vmatmul.mubr.bf16.gmra.mrb[0].mxu0 %v239
    %v283 = vpop.f32.mrb[0].mxu0
    %v284 = vadd.f32 %v223, %v283
    %v285 = vpop.f32.mrb[0].mxu0
    %v286 = vpop.f32.mrb[0].mxu0
    %v287 = vadd.f32 %v223, %v286
    %v288 = vpop.f32.mrb[0].mxu0
    %289 = vdwg.mxu0
    %v290 = vmax.f32 %v276, 0.0
    %v291 = vmax.f32 %v279, 0.0
    %v292 = vmax.f32 %v284, 0.0
    %v293 = vmax.f32 %v287, 0.0
    %v294 = vmax.f32 %v290, %v292
    %v295 = vmax.f32 %v291, %v293
    %v296 = vld [vmem:[#allocation7 + $0x70] sm:$0xff]
    %v297 = vld [vmem:[#allocation7 + $0x78] sm:$0xff]
    %v298 = vld [vmem:[#allocation7 + $0x80] sm:$0xff]
    %v299 = vld [vmem:[#allocation7 + $0x88] sm:$0xff]
    %v300 = vld [vmem:[#allocation7 + $0x90] sm:$0xff]
    %v301 = vld [vmem:[#allocation7 + $0x98] sm:$0xff]
    %v302 = vld [vmem:[#allocation7 + $0xa0] sm:$0xff]
    %v303 = vld [vmem:[#allocation7 + $0xa8] sm:$0xff]
    %v304 = vld [vmem:[#allocation9 + $0x10] sm:$0x1]
    %v305 = vlaneseq
    %v306 = vshrl.u32 %v305, 7
    %v307 = vsub.s32 0, %v306
    %v308 = vrot.slane %v304, %v307
    %v310 = vsel %vm234, %v89, 0
    %v313 = vsel %vm234, %v90, 0
    %315 = vmatprep.subr.mxu0 0.0
    %316 = vmatpush1.msra.mxu0 %v296
    %317 = vmatprep.subr.mxu0 0.0
    %318 = vmatpush1.msra.mxu0 %v297
    %319 = vmatprep.subr.mxu0 0.0
    %320 = vmatpush1.msra.mxu0 %v298
    %321 = vmatprep.subr.mxu0 0.0
    %322 = vmatpush1.msra.mxu0 %v299
    %323 = vmatprep.subr.mxu0 0.0
    %324 = vmatpush1.msra.mxu0 %v300
    %325 = vmatprep.subr.mxu0 0.0
    %326 = vmatpush1.msra.mxu0 %v301
    %327 = vmatprep.subr.mxu0 0.0
    %328 = vmatpush1.msra.mxu0 %v302
    %329 = vmatprep.subr.mxu0 0.0
    %330 = vmatpush1.msra.mxu0 %v303
    %331 = vmatprep.subr.mxu0 0.0
    %332 = vmatpush1.msra.mxu0 0.0
    %333 = vmatprep.subr.mxu0 0.0
    %334 = vmatpush1.msra.mxu0 0.0
    %335 = vmatprep.subr.mxu0 0.0
    %336 = vmatpush1.msra.mxu0 0.0
    %337 = vmatprep.subr.mxu0 0.0
    %338 = vmatpush1.msra.mxu0 0.0
    %339 = vmatprep.subr.mxu0 0.0
    %340 = vmatpush1.msra.mxu0 0.0
    %341 = vmatprep.subr.mxu0 0.0
    %342 = vmatpush1.msra.mxu0 0.0
    %343 = vmatprep.subr.mxu0 0.0
    %344 = vmatpush1.msra.mxu0 0.0
    %345 = vmatprep.subr.mxu0 0.0
    %346 = vmatpush1.msra.mxu0 0.0
    %347 = vmatprep.subr.mxu0 0.0
    %348 = vmatpush1.msra.mxu0 0.0
    %349 = vmatprep.subr.mxu0 0.0
    %350 = vmatpush1.msra.mxu0 0.0
    %351 = vmatprep.subr.mxu0 0.0
    %352 = vmatpush1.msra.mxu0 0.0
    %353 = vmatprep.subr.mxu0 0.0
    %354 = vmatpush1.msra.mxu0 0.0
    %355 = vmatprep.subr.mxu0 0.0
    %356 = vmatpush1.msra.mxu0 0.0
    %357 = vmatprep.subr.mxu0 0.0
    %358 = vmatpush1.msra.mxu0 0.0
    %359 = vmatprep.subr.mxu0 0.0
    %360 = vmatpush1.msra.mxu0 0.0
    %361 = vmatprep.subr.mxu0 0.0
    %362 = vmatpush1.msra.mxu0 0.0
    %363 = vmatprep.subr.mxu0 0.0
    %364 = vmatpush1.msra.mxu0 0.0
    %365 = vmatprep.subr.mxu0 0.0
    %366 = vmatpush1.msra.mxu0 0.0
    %367 = vmatprep.subr.mxu0 0.0
    %368 = vmatpush1.msra.mxu0 0.0
    %369 = vmatprep.subr.mxu0 0.0
    %370 = vmatpush1.msra.mxu0 0.0
    %371 = vmatprep.subr.mxu0 0.0
    %372 = vmatpush1.msra.mxu0 0.0
    %373 = vmatprep.subr.mxu0 0.0
    %374 = vmatpush1.msra.mxu0 0.0
    %375 = vmatprep.subr.mxu0 0.0
    %376 = vmatpush1.msra.mxu0 0.0
    %377 = vmatprep.subr.mxu0 0.0
    %378 = vmatpush1.msra.mxu0 0.0
    %379 = vmatprep.mubr.f32.mxu0 0.0
    %380 = vmatmul.mubr.f32.gmra.mrb[0].mxu0 %v310
    %v381 = vpop.f32.mrb[0].mxu0
    %v382 = vadd.f32 %v308, %v381
    %v383 = vpop.f32.mrb[0].mxu0
    %384 = vmatprep.mubr.f32.mxu0 0.0
    %385 = vmatmul.mubr.f32.gmra.mrb[0].mxu0 %v313
    %v386 = vpop.f32.mrb[0].mxu0
    %v387 = vadd.f32 %v308, %v386
    %v388 = vpop.f32.mrb[0].mxu0
    %389 = vdwg.mxu0
    %v390 = vld [vmem:[#allocation7 + $0xb0] sm:$0xff]
    %v391 = vld [vmem:[#allocation7 + $0xb8] sm:$0xff]
    %v392 = vld [vmem:[#allocation7 + $0xc0] sm:$0xff]
    %v393 = vld [vmem:[#allocation7 + $0xc8] sm:$0xff]
    %vm394 = vcmask 261120
    %v396 = vsel %vm394, %v201, 0
    %v399 = vsel %vm394, %v202, 0
    %v402 = vsel %vm394, %v294, 0
    %v405 = vsel %vm394, %v295, 0
    %407 = vmatprep.subr.mxu0 0.0
    %408 = vmatpush1.msra.mxu0 %v390
    %409 = vmatprep.subr.mxu0 0.0
    %410 = vmatpush1.msra.mxu0 %v391
    %411 = vmatprep.subr.mxu0 0.0
    %412 = vmatpush1.msra.mxu0 %v392
    %413 = vmatprep.subr.mxu0 0.0
    %414 = vmatpush1.msra.mxu0 %v393
    %415 = vmatprep.subr.mxu0 0.0
    %416 = vmatpush1.msra.mxu0 0.0
    %417 = vmatprep.subr.mxu0 0.0
    %418 = vmatpush1.msra.mxu0 0.0
    %419 = vmatprep.subr.mxu0 0.0
    %420 = vmatpush1.msra.mxu0 0.0
    %421 = vmatprep.subr.mxu0 0.0
    %422 = vmatpush1.msra.mxu0 0.0
    %423 = vmatprep.subr.mxu0 0.0
    %424 = vmatpush1.msra.mxu0 0.0
    %425 = vmatprep.subr.mxu0 0.0
    %426 = vmatpush1.msra.mxu0 0.0
    %427 = vmatprep.subr.mxu0 0.0
    %428 = vmatpush1.msra.mxu0 0.0
    %429 = vmatprep.subr.mxu0 0.0
    %430 = vmatpush1.msra.mxu0 0.0
    %431 = vmatprep.subr.mxu0 0.0
    %432 = vmatpush1.msra.mxu0 0.0
    %433 = vmatprep.subr.mxu0 0.0
    %434 = vmatpush1.msra.mxu0 0.0
    %435 = vmatprep.subr.mxu0 0.0
    %436 = vmatpush1.msra.mxu0 0.0
    %437 = vmatprep.subr.mxu0 0.0
    %438 = vmatpush1.msra.mxu0 0.0
    %439 = vmatprep.subr.mxu0 0.0
    %440 = vmatpush1.msra.mxu0 0.0
    %441 = vmatprep.subr.mxu0 0.0
    %442 = vmatpush1.msra.mxu0 0.0
    %443 = vmatprep.subr.mxu0 0.0
    %444 = vmatpush1.msra.mxu0 0.0
    %445 = vmatprep.subr.mxu0 0.0
    %446 = vmatpush1.msra.mxu0 0.0
    %447 = vmatprep.subr.mxu0 0.0
    %448 = vmatpush1.msra.mxu0 0.0
    %449 = vmatprep.subr.mxu0 0.0
    %450 = vmatpush1.msra.mxu0 0.0
    %451 = vmatprep.subr.mxu0 0.0
    %452 = vmatpush1.msra.mxu0 0.0
    %453 = vmatprep.subr.mxu0 0.0
    %454 = vmatpush1.msra.mxu0 0.0
    %455 = vmatprep.subr.mxu0 0.0
    %456 = vmatpush1.msra.mxu0 0.0
    %457 = vmatprep.subr.mxu0 0.0
    %458 = vmatpush1.msra.mxu0 0.0
    %459 = vmatprep.subr.mxu0 0.0
    %460 = vmatpush1.msra.mxu0 0.0
    %461 = vmatprep.subr.mxu0 0.0
    %462 = vmatpush1.msra.mxu0 0.0
    %463 = vmatprep.subr.mxu0 0.0
    %464 = vmatpush1.msra.mxu0 0.0
    %465 = vmatprep.subr.mxu0 0.0
    %466 = vmatpush1.msra.mxu0 0.0
    %467 = vmatprep.subr.mxu0 0.0
    %468 = vmatpush1.msra.mxu0 0.0
    %469 = vmatprep.subr.mxu0 0.0
    %470 = vmatpush1.msra.mxu0 0.0
    %471 = vmatprep.mubr.f32.mxu0 0.0
    %472 = vmatmul.mubr.f32.gmra.mrb[0].mxu0 %v396
    %v473 = vpop.f32.mrb[0].mxu0
    %v474 = vadd.f32 0.0, %v473
    %v475 = vpop.f32.mrb[0].mxu0
    %476 = vmatprep.mubr.f32.mxu0 0.0
    %477 = vmatmul.mubr.f32.gmra.mrb[0].mxu0 %v399
    %v478 = vpop.f32.mrb[0].mxu0
    %v479 = vadd.f32 0.0, %v478
    %v480 = vpop.f32.mrb[0].mxu0
    %481 = vmatprep.mubr.f32.mxu0 0.0
    %482 = vmatmul.mubr.f32.gmra.mrb[0].mxu0 %v402
    %v483 = vpop.f32.mrb[0].mxu0
    %v484 = vadd.f32 0.0, %v483
    %v485 = vpop.f32.mrb[0].mxu0
    %486 = vmatprep.mubr.f32.mxu0 0.0
    %487 = vmatmul.mubr.f32.gmra.mrb[0].mxu0 %v405
    %v488 = vpop.f32.mrb[0].mxu0
    %v489 = vadd.f32 0.0, %v488
    %v490 = vpop.f32.mrb[0].mxu0
    %491 = vdwg.mxu0
    %v492 = vld [vmem:[#allocation7 + $0xd0] sm:$0x1]
    %v493 = vld [vmem:[#allocation9 + $0x18] sm:$0x1]
    %v494 = vadd.f32 %v382, %v474
    %v495 = vadd.f32 %v387, %v479
    %v496 = vmax.f32 %v494, 0.0
    %v497 = vmax.f32 %v495, 0.0
    %v498 = vlaneseq
    %v499 = vshrl.u32 %v498, 7
    %v500 = vsub.s32 0, %v499
    %v501 = vrot.slane %v492, %v500
    %v502 = vmul.f32 %v496, %v501
    %v503 = vmul.f32 %v497, %v501
    %v504 = vsel %vm394, %v502, 0.0
    %505 = vadd.xlane.f32.xlu0 %v504
    %v506 = vpop.xlane.xlu0 %505
    %v507 = vsel %vm394, %v503, 0.0
    %508 = vadd.xlane.f32.xlu0 %v507
    %v509 = vpop.xlane.xlu0 %508
    %v510 = vlaneseq
    %v511 = vshrl.u32 %v510, 7
    %v512 = vsub.s32 0, %v511
    %v513 = vrot.slane %v493, %v512
    %v514 = vadd.f32 %v506, %v513
    %v515 = vadd.f32 %v509, %v513
    %v516 = vmax.f32 %v514, 0.0
    %v517 = vmax.f32 %v515, 0.0
    %v518 = vadd.f32 %v382, %v484
    %v519 = vadd.f32 %v387, %v489
    %v520 = vmax.f32 %v518, 0.0
    %v521 = vmax.f32 %v519, 0.0
    %v522 = vmul.f32 %v520, %v501
    %v523 = vmul.f32 %v521, %v501
    %v524 = vsel %vm394, %v522, 0.0
    %525 = vadd.xlane.f32.xlu0 %v524
    %v526 = vpop.xlane.xlu0 %525
    %v527 = vsel %vm394, %v523, 0.0
    %528 = vadd.xlane.f32.xlu0 %v527
    %v529 = vpop.xlane.xlu0 %528
    %v530 = vadd.f32 %v526, %v513
    %v531 = vadd.f32 %v529, %v513
    %v532 = vmax.f32 %v530, 0.0
    %v533 = vmax.f32 %v531, 0.0
    %536 = vrot.lane.b32.xlu0 %v532, 1
    %v537 = vpop.permute.xlu0 %536
    %538 = vrot.lane.b32.xlu0 %v533, 1
    %v539 = vpop.permute.xlu0 %538
    %vm542 = vcmask 7168
    %v543 = vsel %vm542, %v516, %v537
    %v544 = vsel %vm542, %v517, %v539
    %vm545 = vcmask 15360
    %v546 = vsel %vm545, %v543, -inf
    %547 = vmax.xlane.f32.xlu0 %v546
    %v548 = vpop.xlane.xlu0 %547
    %v549 = vsel %vm545, %v544, -inf
    %550 = vmax.xlane.f32.xlu0 %v549
    %v551 = vpop.xlane.xlu0 %550
    %v552 = vsub.f32 %v543, %v548
    %v553 = vsub.f32 %v544, %v551
    %v554 = vmul.f32 %v552, 1.442695
    %v555 = vpow.pop %v554
    %v556 = vmul.f32 %v553, 1.442695
    %v557 = vpow.pop %v556
    %v558 = vsel %vm545, %v555, 0.0
    %559 = vadd.xlane.f32.xlu0 %v558
    %v560 = vpop.xlane.xlu0 %559
    %v561 = vsel %vm545, %v557, 0.0
    %562 = vadd.xlane.f32.xlu0 %v561
    %v563 = vpop.xlane.xlu0 %562
    %v564 = vrcp.pop %v560
    %v565 = vrcp.pop %v563
    %v566 = vmul.f32 %v555, %v564
    %v567 = vmul.f32 %v557, %v565
    %569 = vset.pattern.permute.xlu0 0
    %570 = vperm.xlu0 %569, %v566
    %v571 = vpop.permute.xlu0 %570
    %574 = vset.pattern.permute.xlu0 0
    %575 = vperm.xlu0 %574, %v567
    %v576 = vpop.permute.xlu0 %575
    %v578 = vmul.f32 %v201, %v571
    %v579 = vmul.f32 %v202, %v576
    %580 = vset.pattern.permute.xlu0 1
    %581 = vperm.xlu0 %580, %v566
    %v582 = vpop.permute.xlu0 %581
    %584 = vset.pattern.permute.xlu0 1
    %585 = vperm.xlu0 %584, %v567
    %v586 = vpop.permute.xlu0 %585
    %v588 = vmul.f32 %v294, %v582
    %v589 = vmul.f32 %v295, %v586
    %v590 = vadd.f32 %v578, %v588
    %v591 = vadd.f32 %v579, %v589
    %594 = vrot.lane.b32.xlu0 %v590, 64
    %v595 = vpop.permute.xlu0 %594
    %596 = vrot.lane.b32.xlu0 %v591, 64
    %v597 = vpop.permute.xlu0 %596
    %v600 = vsel %vm234, %v89, %v595
    %v601 = vsel %vm234, %v90, %v597
    %v602 = vld [vmem:[#allocation7 + $0xd8] sm:$0xff]
    %v603 = vld [vmem:[#allocation7 + $0xe0] sm:$0xff]
    %v604 = vld [vmem:[#allocation7 + $0xe8] sm:$0xff]
    %v605 = vld [vmem:[#allocation7 + $0xf0] sm:$0xff]
    %v606 = vld [vmem:[#allocation7 + $0xf8] sm:$0xff]
    %v607 = vld [vmem:[#allocation7 + $0x100] sm:$0xff]
    %v608 = vld [vmem:[#allocation7 + $0x108] sm:$0xff]
    %v609 = vld [vmem:[#allocation7 + $0x110] sm:$0xff]
    %v610 = vld [vmem:[#allocation7 + $0x118] sm:$0xff]
    %v611 = vld [vmem:[#allocation7 + $0x120] sm:$0xff]
    %v612 = vld [vmem:[#allocation7 + $0x128] sm:$0xff]
    %v613 = vld [vmem:[#allocation7 + $0x130] sm:$0xff]
    %v614 = vld [vmem:[#allocation9 + $0x20] sm:$0x1]
    %v615 = vlaneseq
    %v616 = vshrl.u32 %v615, 7
    %v617 = vsub.s32 0, %v616
    %v618 = vrot.slane %v614, %v617
    %vm619 = vcmask 785408
    %v621 = vsel %vm619, %v600, 0
    %v624 = vsel %vm619, %v601, 0
    %626 = vmatprep.subr.mxu0 0.0
    %627 = vmatpush1.msra.mxu0 %v602
    %628 = vmatprep.subr.mxu0 0.0
    %629 = vmatpush1.msra.mxu0 %v603
    %630 = vmatprep.subr.mxu0 0.0
    %631 = vmatpush1.msra.mxu0 %v604
    %632 = vmatprep.subr.mxu0 0.0
    %633 = vmatpush1.msra.mxu0 %v605
    %634 = vmatprep.subr.mxu0 0.0
    %635 = vmatpush1.msra.mxu0 %v606
    %636 = vmatprep.subr.mxu0 0.0
    %637 = vmatpush1.msra.mxu0 %v607
    %638 = vmatprep.subr.mxu0 0.0
    %639 = vmatpush1.msra.mxu0 %v608
    %640 = vmatprep.subr.mxu0 0.0
    %641 = vmatpush1.msra.mxu0 %v609
    %642 = vmatprep.subr.mxu0 0.0
    %643 = vmatpush1.msra.mxu0 %v610
    %644 = vmatprep.subr.mxu0 0.0
    %645 = vmatpush1.msra.mxu0 %v611
    %646 = vmatprep.subr.mxu0 0.0
    %647 = vmatpush1.msra.mxu0 %v612
    %648 = vmatprep.subr.mxu0 0.0
    %649 = vmatpush1.msra.mxu0 %v613
    %650 = vmatprep.subr.mxu0 0.0
    %651 = vmatpush1.msra.mxu0 0.0
    %652 = vmatprep.subr.mxu0 0.0
    %653 = vmatpush1.msra.mxu0 0.0
    %654 = vmatprep.subr.mxu0 0.0
    %655 = vmatpush1.msra.mxu0 0.0
    %656 = vmatprep.subr.mxu0 0.0
    %657 = vmatpush1.msra.mxu0 0.0
    %658 = vmatprep.subr.mxu0 0.0
    %659 = vmatpush1.msra.mxu0 0.0
    %660 = vmatprep.subr.mxu0 0.0
    %661 = vmatpush1.msra.mxu0 0.0
    %662 = vmatprep.subr.mxu0 0.0
    %663 = vmatpush1.msra.mxu0 0.0
    %664 = vmatprep.subr.mxu0 0.0
    %665 = vmatpush1.msra.mxu0 0.0
    %666 = vmatprep.subr.mxu0 0.0
    %667 = vmatpush1.msra.mxu0 0.0
    %668 = vmatprep.subr.mxu0 0.0
    %669 = vmatpush1.msra.mxu0 0.0
    %670 = vmatprep.subr.mxu0 0.0
    %671 = vmatpush1.msra.mxu0 0.0
    %672 = vmatprep.subr.mxu0 0.0
    %673 = vmatpush1.msra.mxu0 0.0
    %674 = vmatprep.subr.mxu0 0.0
    %675 = vmatpush1.msra.mxu0 0.0
    %676 = vmatprep.subr.mxu0 0.0
    %677 = vmatpush1.msra.mxu0 0.0
    %678 = vmatprep.subr.mxu0 0.0
    %679 = vmatpush1.msra.mxu0 0.0
    %680 = vmatprep.subr.mxu0 0.0
    %681 = vmatpush1.msra.mxu0 0.0
    %682 = vmatprep.subr.mxu0 0.0
    %683 = vmatpush1.msra.mxu0 0.0
    %684 = vmatprep.subr.mxu0 0.0
    %685 = vmatpush1.msra.mxu0 0.0
    %686 = vmatprep.subr.mxu0 0.0
    %687 = vmatpush1.msra.mxu0 0.0
    %688 = vmatprep.subr.mxu0 0.0
    %689 = vmatpush1.msra.mxu0 0.0
    %690 = vmatprep.mubr.f32.mxu0 0.0
    %691 = vmatmul.mubr.f32.gmra.mrb[0].mxu0 %v621
    %v692 = vpop.f32.mrb[0].mxu0
    %v693 = vadd.f32 %v618, %v692
    %v694 = vpop.f32.mrb[0].mxu0
    %695 = vmatprep.mubr.f32.mxu0 0.0
    %696 = vmatmul.mubr.f32.gmra.mrb[0].mxu0 %v624
    %v697 = vpop.f32.mrb[0].mxu0
    %v698 = vadd.f32 %v618, %v697
    %v699 = vpop.f32.mrb[0].mxu0
    %700 = vdwg.mxu0
    %v701 = vmax.f32 %v693, 0.0
    %v702 = vmax.f32 %v698, 0.0
    %v703 = vsel %vm394, %v701, -inf
    %704 = vmax.xlane.f32.xlu0 %v703
    %v705 = vpop.xlane.xlu0 %704
    %v706 = vsel %vm394, %v702, -inf
    %707 = vmax.xlane.f32.xlu0 %v706
    %v708 = vpop.xlane.xlu0 %707
    %v709 = vsub.f32 %v701, %v705
    %v710 = vsub.f32 %v702, %v708
    %v711 = vmul.f32 %v709, 1.442695
    %v712 = vpow.pop %v711
    %v713 = vmul.f32 %v710, 1.442695
    %v714 = vpow.pop %v713
    %v715 = vsel %vm394, %v712, 0.0
    %716 = vadd.xlane.f32.xlu0 %v715
    %v717 = vpop.xlane.xlu0 %716
    %v718 = vsel %vm394, %v714, 0.0
    %719 = vadd.xlane.f32.xlu0 %v718
    %v720 = vpop.xlane.xlu0 %719
    %v721 = vrcp.pop %v717
    %v722 = vrcp.pop %v720
    %v723 = vmul.f32 %v712, %v721
    %v724 = vmul.f32 %v714, %v722
    %v725 = vmul.f32 %v89, %v723
    %v726 = vmul.f32 %v90, %v724
    %vm727 = vcmask 523520
    %v728 = vsel %vm727, %v701, -inf
    %729 = vmax.xlane.f32.xlu0 %v728
    %v730 = vpop.xlane.xlu0 %729
    %v731 = vsel %vm727, %v702, -inf
    %732 = vmax.xlane.f32.xlu0 %v731
    %v733 = vpop.xlane.xlu0 %732
    %v734 = vsub.f32 %v701, %v730
    %v735 = vsub.f32 %v702, %v733
    %v736 = vmul.f32 %v734, 1.442695
    %v737 = vpow.pop %v736
    %v738 = vmul.f32 %v735, 1.442695
    %v739 = vpow.pop %v738
    %742 = vrot.lane.b32.xlu0 %v737, 96
    %v743 = vpop.permute.xlu0 %742
    %744 = vrot.lane.b32.xlu0 %v739, 96
    %v745 = vpop.permute.xlu0 %744
    %v748 = vsel %vm394, %v743, 0.0
    %749 = vadd.xlane.f32.xlu0 %v748
    %v750 = vpop.xlane.xlu0 %749
    %v751 = vsel %vm394, %v745, 0.0
    %752 = vadd.xlane.f32.xlu0 %v751
    %v753 = vpop.xlane.xlu0 %752
    %v754 = vrcp.pop %v750
    %v755 = vrcp.pop %v753
    %v756 = vmul.f32 %v737, %v754
    %v757 = vmul.f32 %v739, %v755
    %v758 = vmul.f32 %v89, %v756
    %v759 = vmul.f32 %v90, %v757
    %v760 = vsel %vm394, %v725, %v758
    %v761 = vsel %vm394, %v726, %v759
    %v762 = vsel %vm234, %v760, %v595
    %v763 = vsel %vm234, %v761, %v597
    %v764 = vld [vmem:[#allocation7 + $0x138] sm:$0xff]
    %v765 = vld [vmem:[#allocation7 + $0x140] sm:$0xff]
    %v766 = vld [vmem:[#allocation7 + $0x148] sm:$0xff]
    %v767 = vld [vmem:[#allocation7 + $0x150] sm:$0xff]
    %v768 = vld [vmem:[#allocation7 + $0x158] sm:$0xff]
    %v769 = vld [vmem:[#allocation7 + $0x160] sm:$0xff]
    %v770 = vld [vmem:[#allocation7 + $0x168] sm:$0xff]
    %v771 = vld [vmem:[#allocation7 + $0x170] sm:$0xff]
    %v772 = vld [vmem:[#allocation7 + $0x178] sm:$0xff]
    %v773 = vld [vmem:[#allocation7 + $0x180] sm:$0xff]
    %v774 = vld [vmem:[#allocation7 + $0x188] sm:$0xff]
    %v775 = vld [vmem:[#allocation7 + $0x190] sm:$0xff]
    %v776 = vld [vmem:[#allocation9 + $0x28] sm:$0x1]
    %v777 = vlaneseq
    %v778 = vshrl.u32 %v777, 7
    %v779 = vsub.s32 0, %v778
    %v780 = vrot.slane %v776, %v779
    %v782 = vsel %vm619, %v762, 0
    %v785 = vsel %vm619, %v763, 0
    %787 = vmatprep.subr.mxu0 0.0
    %788 = vmatpush1.msra.mxu0 %v764
    %789 = vmatprep.subr.mxu0 0.0
    %790 = vmatpush1.msra.mxu0 %v765
    %791 = vmatprep.subr.mxu0 0.0
    %792 = vmatpush1.msra.mxu0 %v766
    %793 = vmatprep.subr.mxu0 0.0
    %794 = vmatpush1.msra.mxu0 %v767
    %795 = vmatprep.subr.mxu0 0.0
    %796 = vmatpush1.msra.mxu0 %v768
    %797 = vmatprep.subr.mxu0 0.0
    %798 = vmatpush1.msra.mxu0 %v769
    %799 = vmatprep.subr.mxu0 0.0
    %800 = vmatpush1.msra.mxu0 %v770
    %801 = vmatprep.subr.mxu0 0.0
    %802 = vmatpush1.msra.mxu0 %v771
    %803 = vmatprep.subr.mxu0 0.0
    %804 = vmatpush1.msra.mxu0 %v772
    %805 = vmatprep.subr.mxu0 0.0
    %806 = vmatpush1.msra.mxu0 %v773
    %807 = vmatprep.subr.mxu0 0.0
    %808 = vmatpush1.msra.mxu0 %v774
    %809 = vmatprep.subr.mxu0 0.0
    %810 = vmatpush1.msra.mxu0 %v775
    %811 = vmatprep.subr.mxu0 0.0
    %812 = vmatpush1.msra.mxu0 0.0
    %813 = vmatprep.subr.mxu0 0.0
    %814 = vmatpush1.msra.mxu0 0.0
    %815 = vmatprep.subr.mxu0 0.0
    %816 = vmatpush1.msra.mxu0 0.0
    %817 = vmatprep.subr.mxu0 0.0
    %818 = vmatpush1.msra.mxu0 0.0
    %819 = vmatprep.subr.mxu0 0.0
    %820 = vmatpush1.msra.mxu0 0.0
    %821 = vmatprep.subr.mxu0 0.0
    %822 = vmatpush1.msra.mxu0 0.0
    %823 = vmatprep.subr.mxu0 0.0
    %824 = vmatpush1.msra.mxu0 0.0
    %825 = vmatprep.subr.mxu0 0.0
    %826 = vmatpush1.msra.mxu0 0.0
    %827 = vmatprep.subr.mxu0 0.0
    %828 = vmatpush1.msra.mxu0 0.0
    %829 = vmatprep.subr.mxu0 0.0
    %830 = vmatpush1.msra.mxu0 0.0
    %831 = vmatprep.subr.mxu0 0.0
    %832 = vmatpush1.msra.mxu0 0.0
    %833 = vmatprep.subr.mxu0 0.0
    %834 = vmatpush1.msra.mxu0 0.0
    %835 = vmatprep.subr.mxu0 0.0
    %836 = vmatpush1.msra.mxu0 0.0
    %837 = vmatprep.subr.mxu0 0.0
    %838 = vmatpush1.msra.mxu0 0.0
    %839 = vmatprep.subr.mxu0 0.0
    %840 = vmatpush1.msra.mxu0 0.0
    %841 = vmatprep.subr.mxu0 0.0
    %842 = vmatpush1.msra.mxu0 0.0
    %843 = vmatprep.subr.mxu0 0.0
    %844 = vmatpush1.msra.mxu0 0.0
    %845 = vmatprep.subr.mxu0 0.0
    %846 = vmatpush1.msra.mxu0 0.0
    %847 = vmatprep.subr.mxu0 0.0
    %848 = vmatpush1.msra.mxu0 0.0
    %849 = vmatprep.subr.mxu0 0.0
    %850 = vmatpush1.msra.mxu0 0.0
    %851 = vmatprep.mubr.f32.mxu0 0.0
    %852 = vmatmul.mubr.f32.gmra.mrb[0].mxu0 %v782
    %v853 = vpop.f32.mrb[0].mxu0
    %v854 = vadd.f32 %v780, %v853
    %v855 = vpop.f32.mrb[0].mxu0
    %856 = vmatprep.mubr.f32.mxu0 0.0
    %857 = vmatmul.mubr.f32.gmra.mrb[0].mxu0 %v785
    %v858 = vpop.f32.mrb[0].mxu0
    %v859 = vadd.f32 %v780, %v858
    %v860 = vpop.f32.mrb[0].mxu0
    %861 = vdwg.mxu0
    %v862 = vmax.f32 %v854, 0.0
    %v863 = vmax.f32 %v859, 0.0
    %v864 = vld [vmem:[#allocation7 + $0x198] sm:$0xff]
    %v865 = vld [vmem:[#allocation7 + $0x1a0] sm:$0xff]
    %v866 = vld [vmem:[#allocation7 + $0x1a8] sm:$0xff]
    %v867 = vld [vmem:[#allocation7 + $0x1b0] sm:$0xff]
    %v868 = vld [vmem:[#allocation7 + $0x1b8] sm:$0xff]
    %v869 = vld [vmem:[#allocation7 + $0x1c0] sm:$0xff]
    %v870 = vld [vmem:[#allocation7 + $0x1c8] sm:$0xff]
    %v871 = vld [vmem:[#allocation7 + $0x1d0] sm:$0xff]
    %v872 = vld [vmem:[#allocation9 + $0x30] sm:$0x1]
    %v873 = vlaneseq
    %v874 = vshrl.u32 %v873, 7
    %v875 = vsub.s32 0, %v874
    %v876 = vrot.slane %v872, %v875
    %v878 = vsel %vm234, %v862, 0
    %v881 = vsel %vm234, %v863, 0
    %883 = vmatprep.subr.mxu0 0.0
    %884 = vmatpush1.msra.mxu0 %v864
    %885 = vmatprep.subr.mxu0 0.0
    %886 = vmatpush1.msra.mxu0 %v865
    %887 = vmatprep.subr.mxu0 0.0
    %888 = vmatpush1.msra.mxu0 %v866
    %889 = vmatprep.subr.mxu0 0.0
    %890 = vmatpush1.msra.mxu0 %v867
    %891 = vmatprep.subr.mxu0 0.0
    %892 = vmatpush1.msra.mxu0 %v868
    %893 = vmatprep.subr.mxu0 0.0
    %894 = vmatpush1.msra.mxu0 %v869
    %895 = vmatprep.subr.mxu0 0.0
    %896 = vmatpush1.msra.mxu0 %v870
    %897 = vmatprep.subr.mxu0 0.0
    %898 = vmatpush1.msra.mxu0 %v871
    %899 = vmatprep.subr.mxu0 0.0
    %900 = vmatpush1.msra.mxu0 0.0
    %901 = vmatprep.subr.mxu0 0.0
    %902 = vmatpush1.msra.mxu0 0.0
    %903 = vmatprep.subr.mxu0 0.0
    %904 = vmatpush1.msra.mxu0 0.0
    %905 = vmatprep.subr.mxu0 0.0
    %906 = vmatpush1.msra.mxu0 0.0
    %907 = vmatprep.subr.mxu0 0.0
    %908 = vmatpush1.msra.mxu0 0.0
    %909 = vmatprep.subr.mxu0 0.0
    %910 = vmatpush1.msra.mxu0 0.0
    %911 = vmatprep.subr.mxu0 0.0
    %912 = vmatpush1.msra.mxu0 0.0
    %913 = vmatprep.subr.mxu0 0.0
    %914 = vmatpush1.msra.mxu0 0.0
    %915 = vmatprep.subr.mxu0 0.0
    %916 = vmatpush1.msra.mxu0 0.0
    %917 = vmatprep.subr.mxu0 0.0
    %918 = vmatpush1.msra.mxu0 0.0
    %919 = vmatprep.subr.mxu0 0.0
    %920 = vmatpush1.msra.mxu0 0.0
    %921 = vmatprep.subr.mxu0 0.0
    %922 = vmatpush1.msra.mxu0 0.0
    %923 = vmatprep.subr.mxu0 0.0
    %924 = vmatpush1.msra.mxu0 0.0
    %925 = vmatprep.subr.mxu0 0.0
    %926 = vmatpush1.msra.mxu0 0.0
    %927 = vmatprep.subr.mxu0 0.0
    %928 = vmatpush1.msra.mxu0 0.0
    %929 = vmatprep.subr.mxu0 0.0
    %930 = vmatpush1.msra.mxu0 0.0
    %931 = vmatprep.subr.mxu0 0.0
    %932 = vmatpush1.msra.mxu0 0.0
    %933 = vmatprep.subr.mxu0 0.0
    %934 = vmatpush1.msra.mxu0 0.0
    %935 = vmatprep.subr.mxu0 0.0
    %936 = vmatpush1.msra.mxu0 0.0
    %937 = vmatprep.subr.mxu0 0.0
    %938 = vmatpush1.msra.mxu0 0.0
    %939 = vmatprep.subr.mxu0 0.0
    %940 = vmatpush1.msra.mxu0 0.0
    %941 = vmatprep.subr.mxu0 0.0
    %942 = vmatpush1.msra.mxu0 0.0
    %943 = vmatprep.subr.mxu0 0.0
    %944 = vmatpush1.msra.mxu0 0.0
    %945 = vmatprep.subr.mxu0 0.0
    %946 = vmatpush1.msra.mxu0 0.0
    %947 = vmatprep.mubr.f32.mxu0 0.0
    %948 = vmatmul.mubr.f32.gmra.mrb[0].mxu0 %v878
    %v949 = vpop.f32.mrb[0].mxu0
    %v950 = vadd.f32 %v876, %v949
    %v951 = vpop.f32.mrb[0].mxu0
    %952 = vmatprep.mubr.f32.mxu0 0.0
    %953 = vmatmul.mubr.f32.gmra.mrb[0].mxu0 %v881
    %v954 = vpop.f32.mrb[0].mxu0
    %v955 = vadd.f32 %v876, %v954
    %v956 = vpop.f32.mrb[0].mxu0
    %957 = vdwg.mxu0
    %v958 = vmax.f32 %v950, 0.0
    %v959 = vmax.f32 %v955, 0.0
    %v960 = vld [vmem:[#allocation7 + $0x1d8] sm:$0x1]
    %v961 = vlaneseq
    %v962 = vshrl.u32 %v961, 7
    %v963 = vsub.s32 0, %v962
    %v964 = vrot.slane %v960, %v963
    %v965 = vmul.f32 %v958, %v964
    %v966 = vmul.f32 %v959, %v964
    %v967 = vsel %vm394, %v965, 0.0
    %968 = vadd.xlane.f32.xlu0 %v967
    %v969 = vpop.xlane.xlu0 %968
    %v970 = vsel %vm394, %v966, 0.0
    %971 = vadd.xlane.f32.xlu0 %v970
    %v972 = vpop.xlane.xlu0 %971
    %v973 = vld [vmem:[#allocation9 + $0x38] sm:$0x1]
    %v974 = vlaneseq
    %v975 = vshrl.u32 %v974, 7
    %v976 = vsub.s32 0, %v975
    %v977 = vrot.slane %v973, %v976
    %v978 = vadd.f32 %v969, %v977
    %v979 = vadd.f32 %v972, %v977
    %v980 = vxor.u32 %v978, 2147483648
    %v981 = vxor.u32 %v979, 2147483648
    %v982 = vmul.f32 %v980, 1.442695
    %v983 = vpow.pop %v982
    %v984 = vmul.f32 %v981, 1.442695
    %v985 = vpow.pop %v984
    %v986 = vadd.f32 %v983, 1.0
    %v987 = vadd.f32 %v985, 1.0
    %v988 = vrcp.pop %v986
    %v989 = vmul.f32 1.0, %v988
    %v990 = vrcp.pop %v987
    %v991 = vmul.f32 1.0, %v990
    %992 = vst.msk [vmem:[%s5] sm:$0xff] %vm542, %v989
    %993 = vst.msk [vmem:[%s5 + $0x8] sm:$0xff] %vm542, %v991
    // Predicated region
    $region42: #{tpu_custom_call.1} parent=1 // pred_check
      _
    $region43: #{tpu_custom_call.1} parent=1 // pred_check_branch
      %995 = sbr.rel (0) target = $region45
    $region44: #{tpu_custom_call.1} parent=1 // pred_region
      _
    $region45: #{tpu_custom_call.1} parent=1 // pred_fallthru
      _
    // Predicated region
    $region46: #{tpu_custom_call.1} parent=1 // pred_check
      _
    $region47: #{tpu_custom_call.1} parent=1 // pred_check_branch
      %997 = sbr.rel (0) target = $region49
    $region48: #{tpu_custom_call.1} parent=1 // pred_region
      _
    $region49: #{tpu_custom_call.1} parent=1 // pred_fallthru
      _
    %998 = vsyncpa [#allocation3], 1
    %999 = vsyncpa [#allocation5], 1
    %1000 = vsyncpa [#allocation8], 1

</llo_original>
